<compile_context>
chip_gen: v5e
topology: v5e:2x2
jax: 0.10.0
libtpu: 0.0.40
codegen_flags: <defaults>
</compile_context>

<pallas_src>
import jax
import jax.numpy as jnp
from jax.experimental import pallas as pl
from jax.experimental.pallas import tpu as pltpu


def _pool_linear_kernel(x_ref, w_ref, b_ref, o_ref):
    """Fused global-average-pool + linear, single step (everything resident in VMEM).

    x_ref: (N, HW, C)  f32 feature maps, channels-last (C=512 on the lane axis)
    w_ref: (C, OUT_P)  bf16 weight, pre-transposed from torch (OUT, C), 1/HW folded in
    b_ref: (1, OUT_P)  f32 bias
    o_ref: (N, OUT_P)  f32 logits
    """
    # Global spatial pool: sublane reduction with fp32 accumulation; no full-block
    # fp32 temp is materialized (input is already fp32).
    f = jnp.sum(x_ref[...], axis=1, dtype=jnp.float32)            # (N, C) f32
    # MXU matmul: bf16 inputs, fp32 accumulation. The 1/HW mean scale is already
    # baked into w_ref, so no post-multiply on the result tile is needed.
    y = jnp.dot(f.astype(jnp.bfloat16), w_ref[...],
                preferred_element_type=jnp.float32)               # (N, OUT_P) f32
    o_ref[...] = y + b_ref[...]


def prepare_params(weight, bias, hw, out_pad=384):
    """One-time param prep: transpose torch-layout (OUT, C) weight to (C, OUT_P) bf16,
    fold the 1/HW mean scale into it, zero-pad OUT -> OUT_P; bias -> (1, OUT_P) f32."""
    out_dim, c = weight.shape
    assert out_pad % 128 == 0 and out_pad >= out_dim
    w_t = jnp.zeros((c, out_pad), jnp.bfloat16)
    w_t = w_t.at[:, :out_dim].set((weight.T / float(hw)).astype(jnp.bfloat16))
    b2d = jnp.zeros((1, out_pad), jnp.float32)
    b2d = b2d.at[:, :out_dim].set(bias.astype(jnp.float32))
    return w_t, b2d


def model_forward(features_nhwc, w_t_padded, b_padded, out_dim):
    """features_nhwc: (N, H, W, C) f32; w_t_padded: (C, OUT_P) bf16 (mean folded in);
    b_padded: (1, OUT_P) f32."""
    n, h, w, c = features_nhwc.shape
    hw = h * w
    out_p = w_t_padded.shape[1]
    assert c == w_t_padded.shape[0] and c % 128 == 0 and out_p % 128 == 0

    # Contiguous (metadata-only) reshape to (N, HW, C); no cast / pad HBM passes.
    # Last two block dims (HW=16, C=512) satisfy the (8, 128) constraint.
    x = features_nhwc.reshape(n, hw, c)

    y_pad = pl.pallas_call(
        _pool_linear_kernel,
        out_shape=jax.ShapeDtypeStruct((n, out_p), jnp.float32),
        in_specs=[
            pl.BlockSpec(memory_space=pltpu.MemorySpace.VMEM),   # full feature block
            pl.BlockSpec(memory_space=pltpu.MemorySpace.VMEM),   # full weight
            pl.BlockSpec(memory_space=pltpu.MemorySpace.VMEM),   # full bias
        ],
        out_specs=pl.BlockSpec(memory_space=pltpu.MemorySpace.VMEM),
    )(x, w_t_padded, b_padded)

    # Drop the zero-padded OUT columns (340 real classes).
    return y_pad[:, :out_dim]


if __name__ == "__main__":
    key = jax.random.PRNGKey(0)
    k_feat, k_w, k_b = jax.random.split(key, 3)

    # Small shapes consistent with the module: backbone emits 512-channel maps.
    N, H, W, C = 2, 4, 4, 512
    OUT = 340

    # Synthetic backbone features (stand-in for self.base(x) output), NHWC fp32.
    features = jax.random.normal(k_feat, (N, H, W, C), dtype=jnp.float32)

    # Deterministic nn.Linear(512, 340)-style init: U(-1/sqrt(C), 1/sqrt(C)).
    bound = 1.0 / jnp.sqrt(jnp.float32(C))
    weight = jax.random.uniform(k_w, (OUT, C), minval=-bound, maxval=bound,
                                dtype=jnp.float32)
    bias = jax.random.uniform(k_b, (OUT,), minval=-bound, maxval=bound,
                              dtype=jnp.float32)

    w_t_padded, b_padded = prepare_params(weight, bias, hw=H * W, out_pad=384)

    y = model_forward(features, w_t_padded, b_padded, OUT)
    y = jax.block_until_ready(y)

    # Cross-check against a plain fp32 JAX reference. The kernel uses a bf16 weight
    # (with 1/HW folded in) and a bf16 pooled activation on the MXU with fp32
    # accumulation, so allow bf16-level tolerance.
    f_ref = jnp.mean(features.reshape(N, H * W, C), axis=1)        # (N, C)
    y_ref = f_ref @ weight.T + bias                                # (N, OUT)
    assert y.shape == (N, OUT)
    assert jnp.allclose(y, y_ref, atol=1e-2, rtol=1e-2), (
        float(jnp.max(jnp.abs(y - y_ref))))

    print("KERNEL_OK")
</pallas_src>

<mosaic_0001>
module attributes {stable_mosaic.version = 11 : i64} {
  func.func @_pool_linear_kernel(%arg0: memref<2x16x512xf32, #tpu.memory_space<vmem>>, %arg1: memref<512x384xbf16, #tpu.memory_space<vmem>>, %arg2: memref<1x384xf32, #tpu.memory_space<vmem>>, %arg3: memref<2x384xf32, #tpu.memory_space<vmem>>) attributes {dimension_semantics = [], scalar_prefetch = 0 : i64, scratch_operands = 0 : i64, tpu.core_type = #tpu.core_type<tc>} {
    %c0 = arith.constant 0 : index
    %c0_0 = arith.constant 0 : index
    %c0_1 = arith.constant 0 : index
    %0 = vector.load %arg0[%c0, %c0_0, %c0_1] : memref<2x16x512xf32, #tpu.memory_space<vmem>>, vector<2x16x512xf32>
    %cst = arith.constant dense<0.000000e+00> : vector<2x512xf32>
    %1 = vector.multi_reduction <add>, %0, %cst [1] : vector<2x16x512xf32> to vector<2x512xf32>
    %2 = arith.truncf %1 : vector<2x512xf32> to vector<2x512xbf16>
    %c0_2 = arith.constant 0 : index
    %c0_3 = arith.constant 0 : index
    %3 = vector.load %arg1[%c0_2, %c0_3] : memref<512x384xbf16, #tpu.memory_space<vmem>>, vector<512x384xbf16>
    %cst_4 = arith.constant dense<0.000000e+00> : vector<2x384xf32>
    %4 = tpu.matmul %2, %3, %cst_4 {dimension_numbers = #tpu.dot_dimension_numbers<[1], [0], [0], [1], [0, 0, 1, 1], [], []>} : vector<2x512xbf16>, vector<512x384xbf16>, vector<2x384xf32> -> vector<2x384xf32>
    %c0_5 = arith.constant 0 : index
    %c0_6 = arith.constant 0 : index
    %5 = vector.load %arg2[%c0_5, %c0_6] : memref<1x384xf32, #tpu.memory_space<vmem>>, vector<1x384xf32>
    %6 = vector.broadcast %5 : vector<1x384xf32> to vector<2x384xf32>
    %7 = arith.addf %4, %6 : vector<2x384xf32>
    %c0_7 = arith.constant 0 : index
    %c0_8 = arith.constant 0 : index
    %8 = vector.load %arg3[%c0_7, %c0_8] : memref<2x384xf32, #tpu.memory_space<vmem>>, vector<2x384xf32>
    tpu.vector_store %arg3[%c0_7, %c0_8], %7 {strides = array<i32>} : memref<2x384xf32, #tpu.memory_space<vmem>>, vector<2x384xf32>,
    return
  }
}

</mosaic_0001>

<llo_original>
// kernel: tpu_custom_call.1
$region0: #{tpu_custom_call.1}
  #allocation0 [shape = 'u32[]', space=smem, size = 0x4, offset = 0x4, fixed_abs, tag = 'smem constant byte address 0x4 - core index']
  #allocation1 [shape = 'u32[72,128]{1,0:T(1,128)}', space=vmem, size = 0x9000, scoped, tag = 'internal scratch']
  %s0 = inlined_call_operand.hbm [shape: f32[2,16,512], index: 0, kind: input, shape index: {}]
  %s1 = inlined_call_operand.hbm [shape: bf16[512,384], index: 1, kind: input, shape index: {}]
  %s2 = inlined_call_operand.hbm [shape: f32[1,384], index: 2, kind: input, shape index: {}]
  %s3 = inlined_call_operand.hbm [shape: f32[2,384], index: 3, kind: output, shape index: {}]
  %s4 = sld [smem:[#allocation0]]
  $region34: #{tpu_custom_call.1} parent=0
    _
  %s6 = ssub.s32 1, %s4
  %s7 = scalar_select 0, %s6, %s4
  $region1: #{tpu_custom_call.1} parent=0
    #allocation2 [shape = 'u8[65536]{0}', space=vmem, size = 0x10000, scoped, tag = 'input window, operand 0, single buffered']
    #allocation3 [shape = 's32[1]{0}', space=sflag, size = 0x4, scoped, tag = 'scoped memory for tpu_custom_call.1']
    #allocation4 [shape = 's32[1]{0}', space=sflag, size = 0x4, scoped, tag = 'scoped memory for tpu_custom_call.1']
    #allocation5 [shape = 'u8[393216]{0}', space=vmem, size = 0x60000, scoped, tag = 'input window, operand 1, single buffered']
    #allocation6 [shape = 's32[1]{0}', space=sflag, size = 0x4, scoped, tag = 'scoped memory for tpu_custom_call.1']
    #allocation7 [shape = 'u8[1536]{0}', space=vmem, size = 0x800, scoped, tag = 'input window, operand 2, single buffered']
    #allocation8 [shape = 'u8[3072]{0}', space=vmem, size = 0xc00, scoped, tag = 'output window, operand 0, single buffered']
    %8 = vsyncpa [#allocation3], 0
    %9 = vsyncpa [#allocation6], 0
    %10 = vsyncpa [#allocation4], 0
    // Predicated region
    $region2: #{tpu_custom_call.1} parent=1 // pred_check
      _
    $region3: #{tpu_custom_call.1} parent=1 // pred_check_branch
      %12 = sbr.rel (0) target = $region5
    $region4: #{tpu_custom_call.1} parent=1 // pred_region
      %14 = vsyncadd [#allocation3], 0
      %s15 = sshll.u32 %s0, 4
      %s16 = int_to_ptr.hbm [resolvable:$true] %s15
      %s17 = sshll.u32 [#allocation2], 4
      %s18 = int_to_ptr.vmem [resolvable:$true] %s17
      %23 = dma.hbm_to_vmem [thread:$0]  %s16, 2048, %s18, [#allocation3], 512, 512, 32
    $region5: #{tpu_custom_call.1} parent=1 // pred_fallthru
      _
    // Predicated region
    $region6: #{tpu_custom_call.1} parent=1 // pred_check
      _
    $region7: #{tpu_custom_call.1} parent=1 // pred_check_branch
      %25 = sbr.rel (0) target = $region9
    $region8: #{tpu_custom_call.1} parent=1 // pred_region
      %27 = vsyncadd [#allocation6], 0
      %s28 = sshll.u32 %s1, 4
      %s29 = int_to_ptr.hbm [resolvable:$true] %s28
      %s30 = sshll.u32 [#allocation5], 4
      %s31 = int_to_ptr.vmem [resolvable:$true] %s30
      %36 = dma.hbm_to_vmem [thread:$0]  %s29, 12288, %s31, [#allocation6], 192, 192, 12
    $region9: #{tpu_custom_call.1} parent=1 // pred_fallthru
      _
    // Predicated region
    $region10: #{tpu_custom_call.1} parent=1 // pred_check
      _
    $region11: #{tpu_custom_call.1} parent=1 // pred_check_branch
      %38 = sbr.rel (0) target = $region13
    $region12: #{tpu_custom_call.1} parent=1 // pred_region
      %40 = vsyncadd [#allocation6], 0
      %s42 = sshll.u32 %s2, 4
      %s43 = int_to_ptr.hbm [resolvable:$true] %s42
      %s44 = sshll.u32 [#allocation7], 4
      %s45 = int_to_ptr.vmem [resolvable:$true] %s44
      %47 = dma.hbm_to_vmem [thread:$0]  %s43, 48, %s45, [#allocation6]
    $region13: #{tpu_custom_call.1} parent=1 // pred_fallthru
      _
    // Predicated region
    $region14: #{tpu_custom_call.1} parent=1 // pred_check
      _
    $region15: #{tpu_custom_call.1} parent=1 // pred_check_branch
      %49 = sbr.rel (0) target = $region17
    $region16: #{tpu_custom_call.1} parent=1 // pred_region
      %51 = dma.done [#allocation3], 2048
    $region17: #{tpu_custom_call.1} parent=1 // pred_fallthru
      _
    // Predicated region
    $region18: #{tpu_custom_call.1} parent=1 // pred_check
      _
    $region19: #{tpu_custom_call.1} parent=1 // pred_check_branch
      %53 = sbr.rel (0) target = $region21
    $region20: #{tpu_custom_call.1} parent=1 // pred_region
      %55 = dma.done [#allocation6], 12288
    $region21: #{tpu_custom_call.1} parent=1 // pred_fallthru
      _
    // Predicated region
    $region22: #{tpu_custom_call.1} parent=1 // pred_check
      _
    $region23: #{tpu_custom_call.1} parent=1 // pred_check_branch
      %57 = sbr.rel (0) target = $region25
    $region24: #{tpu_custom_call.1} parent=1 // pred_region
      %59 = dma.done [#allocation6], 48
    $region25: #{tpu_custom_call.1} parent=1 // pred_fallthru
      _
    %v60 = vld [vmem:[#allocation2] sm:$0xff]
    %v61 = vld [vmem:[#allocation2 + $0x8] sm:$0xff]
    %v62 = vld [vmem:[#allocation2 + $0x10] sm:$0xff]
    %v63 = vld [vmem:[#allocation2 + $0x18] sm:$0xff]
    %v64 = vld [vmem:[#allocation2 + $0x20] sm:$0xff]
    %v65 = vld [vmem:[#allocation2 + $0x28] sm:$0xff]
    %v66 = vld [vmem:[#allocation2 + $0x30] sm:$0xff]
    %v67 = vld [vmem:[#allocation2 + $0x38] sm:$0xff]
    %v68 = vld [vmem:[#allocation2 + $0x40] sm:$0xff]
    %v69 = vld [vmem:[#allocation2 + $0x48] sm:$0xff]
    %v70 = vld [vmem:[#allocation2 + $0x50] sm:$0xff]
    %v71 = vld [vmem:[#allocation2 + $0x58] sm:$0xff]
    %v72 = vld [vmem:[#allocation2 + $0x60] sm:$0xff]
    %v73 = vld [vmem:[#allocation2 + $0x68] sm:$0xff]
    %v74 = vld [vmem:[#allocation2 + $0x70] sm:$0xff]
    %v75 = vld [vmem:[#allocation2 + $0x78] sm:$0xff]
    %v76 = vadd.f32 %v60, %v64
    %v77 = vrot.slane %v76, 4
    %v78 = vadd.f32 %v76, %v77
    %v79 = vrot.slane %v78, 2
    %v80 = vadd.f32 %v78, %v79
    %v81 = vrot.slane %v80, 1
    %v82 = vadd.f32 %v80, %v81
    %v83 = vadd.f32 %v61, %v65
    %v84 = vrot.slane %v83, 4
    %v85 = vadd.f32 %v83, %v84
    %v86 = vrot.slane %v85, 2
    %v87 = vadd.f32 %v85, %v86
    %v88 = vrot.slane %v87, 1
    %v89 = vadd.f32 %v87, %v88
    %v90 = vadd.f32 %v62, %v66
    %v91 = vrot.slane %v90, 4
    %v92 = vadd.f32 %v90, %v91
    %v93 = vrot.slane %v92, 2
    %v94 = vadd.f32 %v92, %v93
    %v95 = vrot.slane %v94, 1
    %v96 = vadd.f32 %v94, %v95
    %v97 = vadd.f32 %v63, %v67
    %v98 = vrot.slane %v97, 4
    %v99 = vadd.f32 %v97, %v98
    %v100 = vrot.slane %v99, 2
    %v101 = vadd.f32 %v99, %v100
    %v102 = vrot.slane %v101, 1
    %v103 = vadd.f32 %v101, %v102
    %v104 = vadd.f32 %v68, %v72
    %v105 = vrot.slane %v104, 4
    %v106 = vadd.f32 %v104, %v105
    %v107 = vrot.slane %v106, 2
    %v108 = vadd.f32 %v106, %v107
    %v109 = vrot.slane %v108, 1
    %v110 = vadd.f32 %v108, %v109
    %v111 = vadd.f32 %v69, %v73
    %v112 = vrot.slane %v111, 4
    %v113 = vadd.f32 %v111, %v112
    %v114 = vrot.slane %v113, 2
    %v115 = vadd.f32 %v113, %v114
    %v116 = vrot.slane %v115, 1
    %v117 = vadd.f32 %v115, %v116
    %v118 = vadd.f32 %v70, %v74
    %v119 = vrot.slane %v118, 4
    %v120 = vadd.f32 %v118, %v119
    %v121 = vrot.slane %v120, 2
    %v122 = vadd.f32 %v120, %v121
    %v123 = vrot.slane %v122, 1
    %v124 = vadd.f32 %v122, %v123
    %v125 = vadd.f32 %v71, %v75
    %v126 = vrot.slane %v125, 4
    %v127 = vadd.f32 %v125, %v126
    %v128 = vrot.slane %v127, 2
    %v129 = vadd.f32 %v127, %v128
    %v130 = vrot.slane %v129, 1
    %v131 = vadd.f32 %v129, %v130
    %v132 = vpack.c.bf16 %v82, %v82
    %v133 = vpack.c.bf16 %v89, %v89
    %v134 = vpack.c.bf16 %v96, %v96
    %v135 = vpack.c.bf16 %v103, %v103
    %v136 = vpack.c.bf16 %v110, %v110
    %v137 = vpack.c.bf16 %v117, %v117
    %v138 = vpack.c.bf16 %v124, %v124
    %v139 = vpack.c.bf16 %v131, %v131
    %v140 = vld [vmem:[#allocation5] sm:$0xff]
    %v141 = vld [vmem:[#allocation5 + $0x8] sm:$0xf]
    %v142 = vld [vmem:[#allocation5 + $0xc] sm:$0xff]
    %v143 = vld [vmem:[#allocation5 + $0x14] sm:$0xf]
    %v144 = vld [vmem:[#allocation5 + $0x18] sm:$0xff]
    %v145 = vld [vmem:[#allocation5 + $0x20] sm:$0xf]
    %v146 = vld [vmem:[#allocation5 + $0x24] sm:$0xff]
    %v147 = vld [vmem:[#allocation5 + $0x2c] sm:$0xf]
    %v148 = vld [vmem:[#allocation5 + $0x30] sm:$0xff]
    %v149 = vld [vmem:[#allocation5 + $0x38] sm:$0xf]
    %v150 = vld [vmem:[#allocation5 + $0x3c] sm:$0xff]
    %v151 = vld [vmem:[#allocation5 + $0x44] sm:$0xf]
    %v152 = vld [vmem:[#allocation5 + $0x48] sm:$0xff]
    %v153 = vld [vmem:[#allocation5 + $0x50] sm:$0xf]
    %v154 = vld [vmem:[#allocation5 + $0x54] sm:$0xff]
    %v155 = vld [vmem:[#allocation5 + $0x5c] sm:$0xf]
    %v156 = vld [vmem:[#allocation5 + $0x60] sm:$0xff]
    %v157 = vld [vmem:[#allocation5 + $0x68] sm:$0xf]
    %v158 = vld [vmem:[#allocation5 + $0x6c] sm:$0xff]
    %v159 = vld [vmem:[#allocation5 + $0x74] sm:$0xf]
    %v160 = vld [vmem:[#allocation5 + $0x78] sm:$0xff]
    %v161 = vld [vmem:[#allocation5 + $0x80] sm:$0xf]
    %v162 = vld [vmem:[#allocation5 + $0x84] sm:$0xff]
    %v163 = vld [vmem:[#allocation5 + $0x8c] sm:$0xf]
    %v164 = vld [vmem:[#allocation5 + $0x90] sm:$0xff]
    %v165 = vld [vmem:[#allocation5 + $0x98] sm:$0xf]
    %v166 = vld [vmem:[#allocation5 + $0x9c] sm:$0xff]
    %v167 = vld [vmem:[#allocation5 + $0xa4] sm:$0xf]
    %v168 = vld [vmem:[#allocation5 + $0xa8] sm:$0xff]
    %v169 = vld [vmem:[#allocation5 + $0xb0] sm:$0xf]
    %v170 = vld [vmem:[#allocation5 + $0xb4] sm:$0xff]
    %v171 = vld [vmem:[#allocation5 + $0xbc] sm:$0xf]
    %v172 = vld [vmem:[#allocation5 + $0xc0] sm:$0xff]
    %v173 = vld [vmem:[#allocation5 + $0xc8] sm:$0xf]
    %v174 = vld [vmem:[#allocation5 + $0xcc] sm:$0xff]
    %v175 = vld [vmem:[#allocation5 + $0xd4] sm:$0xf]
    %v176 = vld [vmem:[#allocation5 + $0xd8] sm:$0xff]
    %v177 = vld [vmem:[#allocation5 + $0xe0] sm:$0xf]
    %v178 = vld [vmem:[#allocation5 + $0xe4] sm:$0xff]
    %v179 = vld [vmem:[#allocation5 + $0xec] sm:$0xf]
    %v180 = vld [vmem:[#allocation5 + $0xf0] sm:$0xff]
    %v181 = vld [vmem:[#allocation5 + $0xf8] sm:$0xf]
    %v182 = vld [vmem:[#allocation5 + $0xfc] sm:$0xff]
    %v183 = vld [vmem:[#allocation5 + $0x104] sm:$0xf]
    %v184 = vld [vmem:[#allocation5 + $0x108] sm:$0xff]
    %v185 = vld [vmem:[#allocation5 + $0x110] sm:$0xf]
    %v186 = vld [vmem:[#allocation5 + $0x114] sm:$0xff]
    %v187 = vld [vmem:[#allocation5 + $0x11c] sm:$0xf]
    %v188 = vld [vmem:[#allocation5 + $0x120] sm:$0xff]
    %v189 = vld [vmem:[#allocation5 + $0x128] sm:$0xf]
    %v190 = vld [vmem:[#allocation5 + $0x12c] sm:$0xff]
    %v191 = vld [vmem:[#allocation5 + $0x134] sm:$0xf]
    %v192 = vld [vmem:[#allocation5 + $0x138] sm:$0xff]
    %v193 = vld [vmem:[#allocation5 + $0x140] sm:$0xf]
    %v194 = vld [vmem:[#allocation5 + $0x144] sm:$0xff]
    %v195 = vld [vmem:[#allocation5 + $0x14c] sm:$0xf]
    %v196 = vld [vmem:[#allocation5 + $0x150] sm:$0xff]
    %v197 = vld [vmem:[#allocation5 + $0x158] sm:$0xf]
    %v198 = vld [vmem:[#allocation5 + $0x15c] sm:$0xff]
    %v199 = vld [vmem:[#allocation5 + $0x164] sm:$0xf]
    %v200 = vld [vmem:[#allocation5 + $0x168] sm:$0xff]
    %v201 = vld [vmem:[#allocation5 + $0x170] sm:$0xf]
    %v202 = vld [vmem:[#allocation5 + $0x174] sm:$0xff]
    %v203 = vld [vmem:[#allocation5 + $0x17c] sm:$0xf]
    %v204 = vld [vmem:[#allocation5 + $0x180] sm:$0xff]
    %v205 = vld [vmem:[#allocation5 + $0x188] sm:$0xf]
    %v206 = vld [vmem:[#allocation5 + $0x18c] sm:$0xff]
    %v207 = vld [vmem:[#allocation5 + $0x194] sm:$0xf]
    %v208 = vld [vmem:[#allocation5 + $0x198] sm:$0xff]
    %v209 = vld [vmem:[#allocation5 + $0x1a0] sm:$0xf]
    %v210 = vld [vmem:[#allocation5 + $0x1a4] sm:$0xff]
    %v211 = vld [vmem:[#allocation5 + $0x1ac] sm:$0xf]
    %v212 = vld [vmem:[#allocation5 + $0x1b0] sm:$0xff]
    %v213 = vld [vmem:[#allocation5 + $0x1b8] sm:$0xf]
    %v214 = vld [vmem:[#allocation5 + $0x1bc] sm:$0xff]
    %v215 = vld [vmem:[#allocation5 + $0x1c4] sm:$0xf]
    %v216 = vld [vmem:[#allocation5 + $0x1c8] sm:$0xff]
    %v217 = vld [vmem:[#allocation5 + $0x1d0] sm:$0xf]
    %v218 = vld [vmem:[#allocation5 + $0x1d4] sm:$0xff]
    %v219 = vld [vmem:[#allocation5 + $0x1dc] sm:$0xf]
    %v220 = vld [vmem:[#allocation5 + $0x1e0] sm:$0xff]
    %v221 = vld [vmem:[#allocation5 + $0x1e8] sm:$0xf]
    %v222 = vld [vmem:[#allocation5 + $0x1ec] sm:$0xff]
    %v223 = vld [vmem:[#allocation5 + $0x1f4] sm:$0xf]
    %v224 = vld [vmem:[#allocation5 + $0x1f8] sm:$0xff]
    %v225 = vld [vmem:[#allocation5 + $0x200] sm:$0xf]
    %v226 = vld [vmem:[#allocation5 + $0x204] sm:$0xff]
    %v227 = vld [vmem:[#allocation5 + $0x20c] sm:$0xf]
    %v228 = vld [vmem:[#allocation5 + $0x210] sm:$0xff]
    %v229 = vld [vmem:[#allocation5 + $0x218] sm:$0xf]
    %v230 = vld [vmem:[#allocation5 + $0x21c] sm:$0xff]
    %v231 = vld [vmem:[#allocation5 + $0x224] sm:$0xf]
    %v232 = vld [vmem:[#allocation5 + $0x228] sm:$0xff]
    %v233 = vld [vmem:[#allocation5 + $0x230] sm:$0xf]
    %v234 = vld [vmem:[#allocation5 + $0x234] sm:$0xff]
    %v235 = vld [vmem:[#allocation5 + $0x23c] sm:$0xf]
    %v236 = vld [vmem:[#allocation5 + $0x240] sm:$0xff]
    %v237 = vld [vmem:[#allocation5 + $0x248] sm:$0xf]
    %v238 = vld [vmem:[#allocation5 + $0x24c] sm:$0xff]
    %v239 = vld [vmem:[#allocation5 + $0x254] sm:$0xf]
    %v240 = vld [vmem:[#allocation5 + $0x258] sm:$0xff]
    %v241 = vld [vmem:[#allocation5 + $0x260] sm:$0xf]
    %v242 = vld [vmem:[#allocation5 + $0x264] sm:$0xff]
    %v243 = vld [vmem:[#allocation5 + $0x26c] sm:$0xf]
    %v244 = vld [vmem:[#allocation5 + $0x270] sm:$0xff]
    %v245 = vld [vmem:[#allocation5 + $0x278] sm:$0xf]
    %v246 = vld [vmem:[#allocation5 + $0x27c] sm:$0xff]
    %v247 = vld [vmem:[#allocation5 + $0x284] sm:$0xf]
    %v248 = vld [vmem:[#allocation5 + $0x288] sm:$0xff]
    %v249 = vld [vmem:[#allocation5 + $0x290] sm:$0xf]
    %v250 = vld [vmem:[#allocation5 + $0x294] sm:$0xff]
    %v251 = vld [vmem:[#allocation5 + $0x29c] sm:$0xf]
    %v252 = vld [vmem:[#allocation5 + $0x2a0] sm:$0xff]
    %v253 = vld [vmem:[#allocation5 + $0x2a8] sm:$0xf]
    %v254 = vld [vmem:[#allocation5 + $0x2ac] sm:$0xff]
    %v255 = vld [vmem:[#allocation5 + $0x2b4] sm:$0xf]
    %v256 = vld [vmem:[#allocation5 + $0x2b8] sm:$0xff]
    %v257 = vld [vmem:[#allocation5 + $0x2c0] sm:$0xf]
    %v258 = vld [vmem:[#allocation5 + $0x2c4] sm:$0xff]
    %v259 = vld [vmem:[#allocation5 + $0x2cc] sm:$0xf]
    %v260 = vld [vmem:[#allocation5 + $0x2d0] sm:$0xff]
    %v261 = vld [vmem:[#allocation5 + $0x2d8] sm:$0xf]
    %v262 = vld [vmem:[#allocation5 + $0x2dc] sm:$0xff]
    %v263 = vld [vmem:[#allocation5 + $0x2e4] sm:$0xf]
    %v264 = vld [vmem:[#allocation5 + $0x2e8] sm:$0xff]
    %v265 = vld [vmem:[#allocation5 + $0x2f0] sm:$0xf]
    %v266 = vld [vmem:[#allocation5 + $0x2f4] sm:$0xff]
    %v267 = vld [vmem:[#allocation5 + $0x2fc] sm:$0xf]
    %v268 = vld [vmem:[#allocation7] sm:$0x7]
    %v270 = vperm.slane %v268, 0
    %v271 = vperm.slane %v268, 1
    %v272 = vperm.slane %v268, 2
    %v284 = vunpack.c.l.b16 %v132
    %v285 = vunpack.c.l.b16 %v133
    %v286 = vunpack.c.l.b16 %v134
    %v287 = vunpack.c.l.b16 %v135
    %v288 = vunpack.c.l.b16 %v136
    %v289 = vunpack.c.l.b16 %v137
    %v290 = vunpack.c.l.b16 %v138
    %v291 = vunpack.c.l.b16 %v139
    %vm292 = vcmask 1041409
    %v293 = vsel %vm292, %v288, %v284
    %v294 = vsel %vm292, %v289, %v285
    %v295 = vsel %vm292, %v290, %v286
    %v296 = vsel %vm292, %v291, %v287
    %v297 = vpack.c.b16 %v293, %v293
    %v298 = vpack.c.b16 %v294, %v294
    %v299 = vpack.c.b16 %v295, %v295
    %v300 = vpack.c.b16 %v296, %v296
    %v433 = vunpack.c.l.b16 %v140
    %v434 = vunpack.c.h.b16 %v140
    %v435 = vunpack.c.l.b16 %v141
    %v436 = vunpack.c.l.b16 %v142
    %v437 = vunpack.c.h.b16 %v142
    %v438 = vunpack.c.l.b16 %v143
    %v439 = vunpack.c.l.b16 %v144
    %v440 = vunpack.c.h.b16 %v144
    %v441 = vunpack.c.l.b16 %v145
    %v442 = vunpack.c.l.b16 %v146
    %v443 = vunpack.c.h.b16 %v146
    %v444 = vunpack.c.l.b16 %v147
    %v445 = vunpack.c.l.b16 %v148
    %v446 = vunpack.c.h.b16 %v148
    %v447 = vunpack.c.l.b16 %v149
    %v448 = vunpack.c.l.b16 %v150
    %v449 = vunpack.c.h.b16 %v150
    %v450 = vunpack.c.l.b16 %v151
    %v451 = vunpack.c.l.b16 %v152
    %v452 = vunpack.c.h.b16 %v152
    %v453 = vunpack.c.l.b16 %v153
    %v454 = vunpack.c.l.b16 %v154
    %v455 = vunpack.c.h.b16 %v154
    %v456 = vunpack.c.l.b16 %v155
    %v457 = vunpack.c.l.b16 %v156
    %v458 = vunpack.c.h.b16 %v156
    %v459 = vunpack.c.l.b16 %v157
    %v460 = vunpack.c.l.b16 %v158
    %v461 = vunpack.c.h.b16 %v158
    %v462 = vunpack.c.l.b16 %v159
    %v463 = vunpack.c.l.b16 %v160
    %v464 = vunpack.c.h.b16 %v160
    %v465 = vunpack.c.l.b16 %v161
    %v466 = vunpack.c.l.b16 %v162
    %v467 = vunpack.c.h.b16 %v162
    %v468 = vunpack.c.l.b16 %v163
    %v469 = vunpack.c.l.b16 %v164
    %v470 = vunpack.c.h.b16 %v164
    %v471 = vunpack.c.l.b16 %v165
    %v472 = vunpack.c.l.b16 %v166
    %v473 = vunpack.c.h.b16 %v166
    %v474 = vunpack.c.l.b16 %v167
    %v475 = vunpack.c.l.b16 %v168
    %v476 = vunpack.c.h.b16 %v168
    %v477 = vunpack.c.l.b16 %v169
    %v478 = vunpack.c.l.b16 %v170
    %v479 = vunpack.c.h.b16 %v170
    %v480 = vunpack.c.l.b16 %v171
    %v481 = vunpack.c.l.b16 %v172
    %v482 = vunpack.c.h.b16 %v172
    %v483 = vunpack.c.l.b16 %v173
    %v484 = vunpack.c.l.b16 %v174
    %v485 = vunpack.c.h.b16 %v174
    %v486 = vunpack.c.l.b16 %v175
    %v487 = vunpack.c.l.b16 %v176
    %v488 = vunpack.c.h.b16 %v176
    %v489 = vunpack.c.l.b16 %v177
    %v490 = vunpack.c.l.b16 %v178
    %v491 = vunpack.c.h.b16 %v178
    %v492 = vunpack.c.l.b16 %v179
    %v493 = vunpack.c.l.b16 %v180
    %v494 = vunpack.c.h.b16 %v180
    %v495 = vunpack.c.l.b16 %v181
    %v496 = vunpack.c.l.b16 %v182
    %v497 = vunpack.c.h.b16 %v182
    %v498 = vunpack.c.l.b16 %v183
    %v499 = vunpack.c.l.b16 %v184
    %v500 = vunpack.c.h.b16 %v184
    %v501 = vunpack.c.l.b16 %v185
    %v502 = vunpack.c.l.b16 %v186
    %v503 = vunpack.c.h.b16 %v186
    %v504 = vunpack.c.l.b16 %v187
    %v505 = vunpack.c.l.b16 %v188
    %v506 = vunpack.c.h.b16 %v188
    %v507 = vunpack.c.l.b16 %v189
    %v508 = vunpack.c.l.b16 %v190
    %v509 = vunpack.c.h.b16 %v190
    %v510 = vunpack.c.l.b16 %v191
    %v511 = vunpack.c.l.b16 %v192
    %v512 = vunpack.c.h.b16 %v192
    %v513 = vunpack.c.l.b16 %v193
    %v514 = vunpack.c.l.b16 %v194
    %v515 = vunpack.c.h.b16 %v194
    %v516 = vunpack.c.l.b16 %v195
    %v517 = vunpack.c.l.b16 %v196
    %v518 = vunpack.c.h.b16 %v196
    %v519 = vunpack.c.l.b16 %v197
    %v520 = vunpack.c.l.b16 %v198
    %v521 = vunpack.c.h.b16 %v198
    %v522 = vunpack.c.l.b16 %v199
    %v523 = vunpack.c.l.b16 %v200
    %v524 = vunpack.c.h.b16 %v200
    %v525 = vunpack.c.l.b16 %v201
    %v526 = vunpack.c.l.b16 %v202
    %v527 = vunpack.c.h.b16 %v202
    %v528 = vunpack.c.l.b16 %v203
    %v529 = vunpack.c.l.b16 %v204
    %v530 = vunpack.c.h.b16 %v204
    %v531 = vunpack.c.l.b16 %v205
    %v532 = vunpack.c.l.b16 %v206
    %v533 = vunpack.c.h.b16 %v206
    %v534 = vunpack.c.l.b16 %v207
    %v535 = vunpack.c.l.b16 %v208
    %v536 = vunpack.c.h.b16 %v208
    %v537 = vunpack.c.l.b16 %v209
    %v538 = vunpack.c.l.b16 %v210
    %v539 = vunpack.c.h.b16 %v210
    %v540 = vunpack.c.l.b16 %v211
    %v541 = vunpack.c.l.b16 %v212
    %v542 = vunpack.c.h.b16 %v212
    %v543 = vunpack.c.l.b16 %v213
    %v544 = vunpack.c.l.b16 %v214
    %v545 = vunpack.c.h.b16 %v214
    %v546 = vunpack.c.l.b16 %v215
    %v547 = vunpack.c.l.b16 %v216
    %v548 = vunpack.c.h.b16 %v216
    %v549 = vunpack.c.l.b16 %v217
    %v550 = vunpack.c.l.b16 %v218
    %v551 = vunpack.c.h.b16 %v218
    %v552 = vunpack.c.l.b16 %v219
    %v553 = vunpack.c.l.b16 %v220
    %v554 = vunpack.c.h.b16 %v220
    %v555 = vunpack.c.l.b16 %v221
    %v556 = vunpack.c.l.b16 %v222
    %v557 = vunpack.c.h.b16 %v222
    %v558 = vunpack.c.l.b16 %v223
    %v559 = vunpack.c.l.b16 %v224
    %v560 = vunpack.c.h.b16 %v224
    %v561 = vunpack.c.l.b16 %v225
    %v562 = vunpack.c.l.b16 %v226
    %v563 = vunpack.c.h.b16 %v226
    %v564 = vunpack.c.l.b16 %v227
    %v565 = vunpack.c.l.b16 %v228
    %v566 = vunpack.c.h.b16 %v228
    %v567 = vunpack.c.l.b16 %v229
    %v568 = vunpack.c.l.b16 %v230
    %v569 = vunpack.c.h.b16 %v230
    %v570 = vunpack.c.l.b16 %v231
    %v571 = vunpack.c.l.b16 %v232
    %v572 = vunpack.c.h.b16 %v232
    %v573 = vunpack.c.l.b16 %v233
    %v574 = vunpack.c.l.b16 %v234
    %v575 = vunpack.c.h.b16 %v234
    %v576 = vunpack.c.l.b16 %v235
    %v577 = vunpack.c.l.b16 %v236
    %v578 = vunpack.c.h.b16 %v236
    %v579 = vunpack.c.l.b16 %v237
    %v580 = vunpack.c.l.b16 %v238
    %v581 = vunpack.c.h.b16 %v238
    %v582 = vunpack.c.l.b16 %v239
    %v583 = vunpack.c.l.b16 %v240
    %v584 = vunpack.c.h.b16 %v240
    %v585 = vunpack.c.l.b16 %v241
    %v586 = vunpack.c.l.b16 %v242
    %v587 = vunpack.c.h.b16 %v242
    %v588 = vunpack.c.l.b16 %v243
    %v589 = vunpack.c.l.b16 %v244
    %v590 = vunpack.c.h.b16 %v244
    %v591 = vunpack.c.l.b16 %v245
    %v592 = vunpack.c.l.b16 %v246
    %v593 = vunpack.c.h.b16 %v246
    %v594 = vunpack.c.l.b16 %v247
    %v595 = vunpack.c.l.b16 %v248
    %v596 = vunpack.c.h.b16 %v248
    %v597 = vunpack.c.l.b16 %v249
    %v598 = vunpack.c.l.b16 %v250
    %v599 = vunpack.c.h.b16 %v250
    %v600 = vunpack.c.l.b16 %v251
    %v601 = vunpack.c.l.b16 %v252
    %v602 = vunpack.c.h.b16 %v252
    %v603 = vunpack.c.l.b16 %v253
    %v604 = vunpack.c.l.b16 %v254
    %v605 = vunpack.c.h.b16 %v254
    %v606 = vunpack.c.l.b16 %v255
    %v607 = vunpack.c.l.b16 %v256
    %v608 = vunpack.c.h.b16 %v256
    %v609 = vunpack.c.l.b16 %v257
    %v610 = vunpack.c.l.b16 %v258
    %v611 = vunpack.c.h.b16 %v258
    %v612 = vunpack.c.l.b16 %v259
    %v613 = vunpack.c.l.b16 %v260
    %v614 = vunpack.c.h.b16 %v260
    %v615 = vunpack.c.l.b16 %v261
    %v616 = vunpack.c.l.b16 %v262
    %v617 = vunpack.c.h.b16 %v262
    %v618 = vunpack.c.l.b16 %v263
    %v619 = vunpack.c.l.b16 %v264
    %v620 = vunpack.c.h.b16 %v264
    %v621 = vunpack.c.l.b16 %v265
    %v622 = vunpack.c.l.b16 %v266
    %v623 = vunpack.c.h.b16 %v266
    %v624 = vunpack.c.l.b16 %v267
    %v625 = vpack.c.b16 %v436, %v433
    %v626 = vpack.c.b16 %v437, %v434
    %v627 = vpack.c.b16 %v438, %v435
    %v628 = vpack.c.b16 %v442, %v439
    %v629 = vpack.c.b16 %v443, %v440
    %v630 = vpack.c.b16 %v444, %v441
    %v631 = vpack.c.b16 %v448, %v445
    %v632 = vpack.c.b16 %v449, %v446
    %v633 = vpack.c.b16 %v450, %v447
    %v634 = vpack.c.b16 %v454, %v451
    %v635 = vpack.c.b16 %v455, %v452
    %v636 = vpack.c.b16 %v456, %v453
    %v637 = vpack.c.b16 %v460, %v457
    %v638 = vpack.c.b16 %v461, %v458
    %v639 = vpack.c.b16 %v462, %v459
    %v640 = vpack.c.b16 %v466, %v463
    %v641 = vpack.c.b16 %v467, %v464
    %v642 = vpack.c.b16 %v468, %v465
    %v643 = vpack.c.b16 %v472, %v469
    %v644 = vpack.c.b16 %v473, %v470
    %v645 = vpack.c.b16 %v474, %v471
    %v646 = vpack.c.b16 %v478, %v475
    %v647 = vpack.c.b16 %v479, %v476
    %v648 = vpack.c.b16 %v480, %v477
    %v649 = vpack.c.b16 %v484, %v481
    %v650 = vpack.c.b16 %v485, %v482
    %v651 = vpack.c.b16 %v486, %v483
    %v652 = vpack.c.b16 %v490, %v487
    %v653 = vpack.c.b16 %v491, %v488
    %v654 = vpack.c.b16 %v492, %v489
    %v655 = vpack.c.b16 %v496, %v493
    %v656 = vpack.c.b16 %v497, %v494
    %v657 = vpack.c.b16 %v498, %v495
    %v658 = vpack.c.b16 %v502, %v499
    %v659 = vpack.c.b16 %v503, %v500
    %v660 = vpack.c.b16 %v504, %v501
    %v661 = vpack.c.b16 %v508, %v505
    %v662 = vpack.c.b16 %v509, %v506
    %v663 = vpack.c.b16 %v510, %v507
    %v664 = vpack.c.b16 %v514, %v511
    %v665 = vpack.c.b16 %v515, %v512
    %v666 = vpack.c.b16 %v516, %v513
    %v667 = vpack.c.b16 %v520, %v517
    %v668 = vpack.c.b16 %v521, %v518
    %v669 = vpack.c.b16 %v522, %v519
    %v670 = vpack.c.b16 %v526, %v523
    %v671 = vpack.c.b16 %v527, %v524
    %v672 = vpack.c.b16 %v528, %v525
    %v673 = vpack.c.b16 %v532, %v529
    %v674 = vpack.c.b16 %v533, %v530
    %v675 = vpack.c.b16 %v534, %v531
    %v676 = vpack.c.b16 %v538, %v535
    %v677 = vpack.c.b16 %v539, %v536
    %v678 = vpack.c.b16 %v540, %v537
    %v679 = vpack.c.b16 %v544, %v541
    %v680 = vpack.c.b16 %v545, %v542
    %v681 = vpack.c.b16 %v546, %v543
    %v682 = vpack.c.b16 %v550, %v547
    %v683 = vpack.c.b16 %v551, %v548
    %v684 = vpack.c.b16 %v552, %v549
    %v685 = vpack.c.b16 %v556, %v553
    %v686 = vpack.c.b16 %v557, %v554
    %v687 = vpack.c.b16 %v558, %v555
    %v688 = vpack.c.b16 %v562, %v559
    %v689 = vpack.c.b16 %v563, %v560
    %v690 = vpack.c.b16 %v564, %v561
    %v691 = vpack.c.b16 %v568, %v565
    %v692 = vpack.c.b16 %v569, %v566
    %v693 = vpack.c.b16 %v570, %v567
    %v694 = vpack.c.b16 %v574, %v571
    %v695 = vpack.c.b16 %v575, %v572
    %v696 = vpack.c.b16 %v576, %v573
    %v697 = vpack.c.b16 %v580, %v577
    %v698 = vpack.c.b16 %v581, %v578
    %v699 = vpack.c.b16 %v582, %v579
    %v700 = vpack.c.b16 %v586, %v583
    %v701 = vpack.c.b16 %v587, %v584
    %v702 = vpack.c.b16 %v588, %v585
    %v703 = vpack.c.b16 %v592, %v589
    %v704 = vpack.c.b16 %v593, %v590
    %v705 = vpack.c.b16 %v594, %v591
    %v706 = vpack.c.b16 %v598, %v595
    %v707 = vpack.c.b16 %v599, %v596
    %v708 = vpack.c.b16 %v600, %v597
    %v709 = vpack.c.b16 %v604, %v601
    %v710 = vpack.c.b16 %v605, %v602
    %v711 = vpack.c.b16 %v606, %v603
    %v712 = vpack.c.b16 %v610, %v607
    %v713 = vpack.c.b16 %v611, %v608
    %v714 = vpack.c.b16 %v612, %v609
    %v715 = vpack.c.b16 %v616, %v613
    %v716 = vpack.c.b16 %v617, %v614
    %v717 = vpack.c.b16 %v618, %v615
    %v718 = vpack.c.b16 %v622, %v619
    %v719 = vpack.c.b16 %v623, %v620
    %v720 = vpack.c.b16 %v624, %v621
    %817 = vmatpush.bf16.msra.mxu0 %v646
    %818 = vmatpush.bf16.msra.mxu0 %v643
    %819 = vmatpush.bf16.msra.mxu0 %v640
    %820 = vmatpush.bf16.msra.mxu0 %v637
    %821 = vmatpush.bf16.msra.mxu0 %v634
    %822 = vmatpush.bf16.msra.mxu0 %v631
    %823 = vmatpush.bf16.msra.mxu0 %v628
    %824 = vmatpush.bf16.msra.mxu0 %v625
    %825 = vmatmul.bf16.gmra.mxu0 %v297
    %v826 = vpop.f32.mrf.mxu0
    %v827 = vadd.f32 %v270, %v826
    %v828 = vpop.f32.mrf.mxu0
    %829 = vdwg.mxu0
    %830 = vmatpush.bf16.msra.mxu0 %v670
    %831 = vmatpush.bf16.msra.mxu0 %v667
    %832 = vmatpush.bf16.msra.mxu0 %v664
    %833 = vmatpush.bf16.msra.mxu0 %v661
    %834 = vmatpush.bf16.msra.mxu0 %v658
    %835 = vmatpush.bf16.msra.mxu0 %v655
    %836 = vmatpush.bf16.msra.mxu0 %v652
    %837 = vmatpush.bf16.msra.mxu0 %v649
    %838 = vmatmul.bf16.gmra.mxu0 %v298
    %v839 = vpop.f32.mrf.mxu0
    %v840 = vadd.f32 %v827, %v839
    %v841 = vpop.f32.mrf.mxu0
    %842 = vdwg.mxu0
    %843 = vmatpush.bf16.msra.mxu0 %v694
    %844 = vmatpush.bf16.msra.mxu0 %v691
    %845 = vmatpush.bf16.msra.mxu0 %v688
    %846 = vmatpush.bf16.msra.mxu0 %v685
    %847 = vmatpush.bf16.msra.mxu0 %v682
    %848 = vmatpush.bf16.msra.mxu0 %v679
    %849 = vmatpush.bf16.msra.mxu0 %v676
    %850 = vmatpush.bf16.msra.mxu0 %v673
    %851 = vmatmul.bf16.gmra.mxu0 %v299
    %v852 = vpop.f32.mrf.mxu0
    %v853 = vadd.f32 %v840, %v852
    %v854 = vpop.f32.mrf.mxu0
    %855 = vdwg.mxu0
    %856 = vmatpush.bf16.msra.mxu0 %v718
    %857 = vmatpush.bf16.msra.mxu0 %v715
    %858 = vmatpush.bf16.msra.mxu0 %v712
    %859 = vmatpush.bf16.msra.mxu0 %v709
    %860 = vmatpush.bf16.msra.mxu0 %v706
    %861 = vmatpush.bf16.msra.mxu0 %v703
    %862 = vmatpush.bf16.msra.mxu0 %v700
    %863 = vmatpush.bf16.msra.mxu0 %v697
    %864 = vmatmul.bf16.gmra.mxu0 %v300
    %v865 = vpop.f32.mrf.mxu0
    %v866 = vadd.f32 %v853, %v865
    %v867 = vpop.f32.mrf.mxu0
    %868 = vdwg.mxu0
    %869 = vmatpush.bf16.msra.mxu0 %v647
    %870 = vmatpush.bf16.msra.mxu0 %v644
    %871 = vmatpush.bf16.msra.mxu0 %v641
    %872 = vmatpush.bf16.msra.mxu0 %v638
    %873 = vmatpush.bf16.msra.mxu0 %v635
    %874 = vmatpush.bf16.msra.mxu0 %v632
    %875 = vmatpush.bf16.msra.mxu0 %v629
    %876 = vmatpush.bf16.msra.mxu0 %v626
    %877 = vmatmul.bf16.gmra.mxu0 %v297
    %v878 = vpop.f32.mrf.mxu0
    %v879 = vadd.f32 %v271, %v878
    %v880 = vpop.f32.mrf.mxu0
    %881 = vdwg.mxu0
    %882 = vmatpush.bf16.msra.mxu0 %v671
    %883 = vmatpush.bf16.msra.mxu0 %v668
    %884 = vmatpush.bf16.msra.mxu0 %v665
    %885 = vmatpush.bf16.msra.mxu0 %v662
    %886 = vmatpush.bf16.msra.mxu0 %v659
    %887 = vmatpush.bf16.msra.mxu0 %v656
    %888 = vmatpush.bf16.msra.mxu0 %v653
    %889 = vmatpush.bf16.msra.mxu0 %v650
    %890 = vmatmul.bf16.gmra.mxu0 %v298
    %v891 = vpop.f32.mrf.mxu0
    %v892 = vadd.f32 %v879, %v891
    %v893 = vpop.f32.mrf.mxu0
    %894 = vdwg.mxu0
    %895 = vmatpush.bf16.msra.mxu0 %v695
    %896 = vmatpush.bf16.msra.mxu0 %v692
    %897 = vmatpush.bf16.msra.mxu0 %v689
    %898 = vmatpush.bf16.msra.mxu0 %v686
    %899 = vmatpush.bf16.msra.mxu0 %v683
    %900 = vmatpush.bf16.msra.mxu0 %v680
    %901 = vmatpush.bf16.msra.mxu0 %v677
    %902 = vmatpush.bf16.msra.mxu0 %v674
    %903 = vmatmul.bf16.gmra.mxu0 %v299
    %v904 = vpop.f32.mrf.mxu0
    %v905 = vadd.f32 %v892, %v904
    %v906 = vpop.f32.mrf.mxu0
    %907 = vdwg.mxu0
    %908 = vmatpush.bf16.msra.mxu0 %v719
    %909 = vmatpush.bf16.msra.mxu0 %v716
    %910 = vmatpush.bf16.msra.mxu0 %v713
    %911 = vmatpush.bf16.msra.mxu0 %v710
    %912 = vmatpush.bf16.msra.mxu0 %v707
    %913 = vmatpush.bf16.msra.mxu0 %v704
    %914 = vmatpush.bf16.msra.mxu0 %v701
    %915 = vmatpush.bf16.msra.mxu0 %v698
    %916 = vmatmul.bf16.gmra.mxu0 %v300
    %v917 = vpop.f32.mrf.mxu0
    %v918 = vadd.f32 %v905, %v917
    %v919 = vpop.f32.mrf.mxu0
    %920 = vdwg.mxu0
    %921 = vmatpush.bf16.msra.mxu0 %v648
    %922 = vmatpush.bf16.msra.mxu0 %v645
    %923 = vmatpush.bf16.msra.mxu0 %v642
    %924 = vmatpush.bf16.msra.mxu0 %v639
    %925 = vmatpush.bf16.msra.mxu0 %v636
    %926 = vmatpush.bf16.msra.mxu0 %v633
    %927 = vmatpush.bf16.msra.mxu0 %v630
    %928 = vmatpush.bf16.msra.mxu0 %v627
    %929 = vmatmul.bf16.gmra.mxu0 %v297
    %v930 = vpop.f32.mrf.mxu0
    %v931 = vadd.f32 %v272, %v930
    %v932 = vpop.f32.mrf.mxu0
    %933 = vdwg.mxu0
    %934 = vmatpush.bf16.msra.mxu0 %v672
    %935 = vmatpush.bf16.msra.mxu0 %v669
    %936 = vmatpush.bf16.msra.mxu0 %v666
    %937 = vmatpush.bf16.msra.mxu0 %v663
    %938 = vmatpush.bf16.msra.mxu0 %v660
    %939 = vmatpush.bf16.msra.mxu0 %v657
    %940 = vmatpush.bf16.msra.mxu0 %v654
    %941 = vmatpush.bf16.msra.mxu0 %v651
    %942 = vmatmul.bf16.gmra.mxu0 %v298
    %v943 = vpop.f32.mrf.mxu0
    %v944 = vadd.f32 %v931, %v943
    %v945 = vpop.f32.mrf.mxu0
    %946 = vdwg.mxu0
    %947 = vmatpush.bf16.msra.mxu0 %v696
    %948 = vmatpush.bf16.msra.mxu0 %v693
    %949 = vmatpush.bf16.msra.mxu0 %v690
    %950 = vmatpush.bf16.msra.mxu0 %v687
    %951 = vmatpush.bf16.msra.mxu0 %v684
    %952 = vmatpush.bf16.msra.mxu0 %v681
    %953 = vmatpush.bf16.msra.mxu0 %v678
    %954 = vmatpush.bf16.msra.mxu0 %v675
    %955 = vmatmul.bf16.gmra.mxu0 %v299
    %v956 = vpop.f32.mrf.mxu0
    %v957 = vadd.f32 %v944, %v956
    %v958 = vpop.f32.mrf.mxu0
    %959 = vdwg.mxu0
    %960 = vmatpush.bf16.msra.mxu0 %v720
    %961 = vmatpush.bf16.msra.mxu0 %v717
    %962 = vmatpush.bf16.msra.mxu0 %v714
    %963 = vmatpush.bf16.msra.mxu0 %v711
    %964 = vmatpush.bf16.msra.mxu0 %v708
    %965 = vmatpush.bf16.msra.mxu0 %v705
    %966 = vmatpush.bf16.msra.mxu0 %v702
    %967 = vmatpush.bf16.msra.mxu0 %v699
    %968 = vmatmul.bf16.gmra.mxu0 %v300
    %v969 = vpop.f32.mrf.mxu0
    %v970 = vadd.f32 %v957, %v969
    %v971 = vpop.f32.mrf.mxu0
    %972 = vdwg.mxu0
    %v976 = vrot.slane %v918, 6
    %v977 = vrot.slane %v970, 4
    %vm978 = vcmask 1041408
    %v979 = vsel %vm978, %v866, %v976
    %vm980 = vcmask 1043456
    %v981 = vsel %vm980, %v979, %v977
    %983 = vst [vmem:[#allocation8] sm:$0x3f] %v981
    // Predicated region
    $region26: #{tpu_custom_call.1} parent=1 // pred_check
      _
    $region27: #{tpu_custom_call.1} parent=1 // pred_check_branch
      %985 = sbr.rel (0) target = $region29
    $region28: #{tpu_custom_call.1} parent=1 // pred_region
      %987 = vsyncadd [#allocation4], 0
      %s989 = sshll.u32 [#allocation8], 4
      %s990 = int_to_ptr.vmem [resolvable:$true] %s989
      %s991 = sshll.u32 %s3, 4
      %s992 = int_to_ptr.hbm [resolvable:$true] %s991
      %994 = dma.vmem_to_hbm [thread:$0]  %s990, 96, %s992, [#allocation4]
    $region29: #{tpu_custom_call.1} parent=1 // pred_fallthru
      _
    // Predicated region
    $region30: #{tpu_custom_call.1} parent=1 // pred_check
      _
    $region31: #{tpu_custom_call.1} parent=1 // pred_check_branch
      %996 = sbr.rel (0) target = $region33
    $region32: #{tpu_custom_call.1} parent=1 // pred_region
      %998 = dma.done [#allocation4], 96
    $region33: #{tpu_custom_call.1} parent=1 // pred_fallthru
      _
    %999 = vsyncpa [#allocation3], 1
    %1000 = vsyncpa [#allocation6], 1
    %1001 = vsyncpa [#allocation4], 1

</llo_original>
